<compile_context>
chip_gen: v7x
topology: tpu7x:2x2x1
jax: 0.10.0
libtpu: 0.0.40
codegen_flags: <defaults>
</compile_context>

<pallas_src>
import jax
import jax.numpy as jnp
from jax import lax
from jax.experimental import pallas as pl
from jax.experimental.pallas import tpu as pltpu


def mf_kernel_onehot(uid_ref, iid_ref, utab_ref, itab_ref, out_ref):
    # uid_ref / iid_ref : (tb, 1) int32 VMEM blocks (already clamped in the wrapper)
    # utab_ref / itab_ref: (n_user, E) / (n_item, E) f32, fully resident (single copy) in VMEM
    # out_ref            : (1, tb) f32 lane-dense output block
    n_user, e = utab_ref.shape
    n_item = itab_ref.shape[0]
    tb = out_ref.shape[1]

    uid = uid_ref[...]                                              # (tb, 1) int32
    iid = iid_ref[...]                                              # (tb, 1) int32

    onehot_u = (lax.broadcasted_iota(jnp.int32, (tb, n_user), 1) == uid).astype(jnp.float32)
    onehot_i = (lax.broadcasted_iota(jnp.int32, (tb, n_item), 1) == iid).astype(jnp.float32)

    # Vectorized gather on the MXU (HIGHEST precision keeps the f32 rows exact; the one-hot
    # entries are exactly 0/1, so this is a pure row selection).
    gu = jnp.dot(onehot_u, utab_ref[...],
                 preferred_element_type=jnp.float32,
                 precision=lax.Precision.HIGHEST)                   # (tb, E)
    gi = jnp.dot(onehot_i, itab_ref[...],
                 preferred_element_type=jnp.float32,
                 precision=lax.Precision.HIGHEST)                   # (tb, E)

    prod = gu * gi                                                  # (tb, E)

    # Per-row dot product directly in lane-dense (1, tb) layout:
    #   s[0, j] = sum_k prod[j, k]  ==  ones(1, E) contracted with prod over E.
    ones_row = jnp.ones((1, e), dtype=jnp.float32)
    s = lax.dot_general(ones_row, prod,
                        dimension_numbers=(((1,), (1,)), ((), ())),
                        preferred_element_type=jnp.float32)         # (1, tb)
    out_ref[...] = jax.nn.sigmoid(s).astype(out_ref.dtype)


def mf_kernel_loop(uid_ref, iid_ref, utab_ref, itab_ref, out_ref, prod_buf):
    # uid_ref / iid_ref : (B_pad,) int32 in SMEM (scalar-prefetched, pre-clamped)
    # utab_ref / itab_ref: f32 tables, fully resident (single copy) in VMEM
    # out_ref            : (1, tb) f32 lane-dense output block
    # prod_buf           : (tb, E) f32 VMEM scratch — fused (user_row * item_row) products
    tb, e = prod_buf.shape
    base = pl.program_id(0) * tb

    def gather_row(j, carry):
        u = uid_ref[base + j]
        it = iid_ref[base + j]
        # Fused gather + multiply: one row store per batch element (halves vst traffic).
        prod_buf[pl.ds(j, 1), :] = utab_ref[pl.ds(u, 1), :] * itab_ref[pl.ds(it, 1), :]
        return carry

    # Unrolled so the scheduler can overlap the 2 dynamic row loads + 1 row store per row.
    lax.fori_loop(0, tb, gather_row, 0, unroll=8)

    ones_row = jnp.ones((1, e), dtype=jnp.float32)
    s = lax.dot_general(ones_row, prod_buf[...],
                        dimension_numbers=(((1,), (1,)), ((), ())),
                        preferred_element_type=jnp.float32)         # (1, tb)
    out_ref[...] = jax.nn.sigmoid(s).astype(out_ref.dtype)


def _vmem_capacity_bytes():
    try:
        info = pltpu.get_tpu_info()
        return int(getattr(info, "vmem_capacity_bytes", 64 << 20))
    except Exception:
        return 64 << 20   # conservative (v7x-sized) fallback


def mf_forward(user_id, item_id, user_emb, item_emb, *, onehot_vocab_limit=2048):
    """Pallas MF forward. user_id/item_id: (B,) int; tables: (vocab, E) f32 -> (B,) f32."""
    b = int(user_id.shape[0])
    n_user, e = user_emb.shape
    n_item, e2 = item_emb.shape
    assert e == e2, "embedding sizes must match"

    user_emb = user_emb.astype(jnp.float32)
    item_emb = item_emb.astype(jnp.float32)

    # Batch tiling: whole batch in one step when small; 128-wide tiles otherwise (256 for very
    # large B to amortize per-step overhead) — large batches always yield >= 2 grid steps so
    # the "parallel" axis can shard across TensorCores on multi-core chips.
    if b <= 128:
        tb = b
    elif b >= 1024:
        tb = 256
    else:
        tb = 128
    num_tiles = -(-b // tb)
    b_pad = num_tiles * tb

    # Clamp IDs once in the wrapper (PyTorch would raise on OOB; Pallas VMEM reads have no
    # bounds check, so clamping keeps reads in-bounds without per-row min/max in the hot loop).
    uid = jnp.clip(user_id.astype(jnp.int32).reshape(b), 0, n_user - 1)
    iid = jnp.clip(item_id.astype(jnp.int32).reshape(b), 0, n_item - 1)
    if b_pad != b:
        uid = jnp.pad(uid, (0, b_pad - b))   # pad with ID 0 (valid row), sliced off below
        iid = jnp.pad(iid, (0, b_pad - b))

    use_onehot = max(n_user, n_item) <= onehot_vocab_limit

    # VMEM budget (generation-aware): single-buffered resident tables + scratch + headroom.
    table_bytes = (n_user + n_item) * e * 4
    scratch_bytes = tb * e * 4 + 2 * max(n_user, n_item) * tb * 4
    needed = table_bytes + scratch_bytes + 8 * b_pad * 4 + (4 << 20)
    vmem_cap = _vmem_capacity_bytes()
    vmem_limit = int(max(16 << 20, min(needed, vmem_cap - (8 << 20))))

    compiler_params = pltpu.CompilerParams(
        dimension_semantics=("parallel",),
        vmem_limit_bytes=vmem_limit,
    )
    out_shape = jax.ShapeDtypeStruct((1, b_pad), jnp.float32)

    if use_onehot:
        grid_spec = pltpu.PrefetchScalarGridSpec(
            num_scalar_prefetch=0,
            grid=(num_tiles,),
            in_specs=[
                pl.BlockSpec((tb, 1), lambda i: (i, 0)),                      # uid column block
                pl.BlockSpec((tb, 1), lambda i: (i, 0)),                      # iid column block
                pl.BlockSpec(memory_space=pltpu.MemorySpace.VMEM),            # whole user table
                pl.BlockSpec(memory_space=pltpu.MemorySpace.VMEM),            # whole item table
            ],
            out_specs=pl.BlockSpec((1, tb), lambda i: (0, i)),                # lane-dense output
        )
        out2d = pl.pallas_call(
            mf_kernel_onehot,
            out_shape=out_shape,
            grid_spec=grid_spec,
            compiler_params=compiler_params,
        )(uid.reshape(b_pad, 1), iid.reshape(b_pad, 1), user_emb, item_emb)
    else:
        grid_spec = pltpu.PrefetchScalarGridSpec(
            num_scalar_prefetch=2,                                            # uid, iid -> SMEM
            grid=(num_tiles,),
            in_specs=[
                pl.BlockSpec(memory_space=pltpu.MemorySpace.VMEM),            # whole user table
                pl.BlockSpec(memory_space=pltpu.MemorySpace.VMEM),            # whole item table
            ],
            out_specs=pl.BlockSpec((1, tb), lambda i, uid_ref, iid_ref: (0, i)),
            scratch_shapes=[pltpu.VMEM((tb, e), jnp.float32)],                # fused prod rows
        )
        out2d = pl.pallas_call(
            mf_kernel_loop,
            out_shape=out_shape,
            grid_spec=grid_spec,
            compiler_params=compiler_params,
        )(uid, iid, user_emb, item_emb)

    return out2d.reshape(b_pad)[:b]


if __name__ == "__main__":
    # Deterministic synthetic parameters / inputs (module __init__: n_user, n_item, emb_size).
    n_user, n_item, emb_size = 64, 96, 128
    batch = 16
    init_range = 0.01

    key = jax.random.PRNGKey(0)
    k_u, k_i, k_uid, k_iid = jax.random.split(key, 4)

    user_emb = init_range * jax.random.normal(k_u, (n_user, emb_size), dtype=jnp.float32)
    item_emb = init_range * jax.random.normal(k_i, (n_item, emb_size), dtype=jnp.float32)

    user_id = jax.random.randint(k_uid, (batch,), 0, n_user, dtype=jnp.int32)
    item_id = jax.random.randint(k_iid, (batch,), 0, n_item, dtype=jnp.int32)

    # Pure-JAX reference (mirrors the torch forward exactly).
    ref = jax.nn.sigmoid(jnp.sum(user_emb[user_id] * item_emb[item_id], axis=-1))

    # Small-batch, single-tile, one-hot MXU gather path.
    out = jax.block_until_ready(mf_forward(user_id, item_id, user_emb, item_emb))
    assert out.shape == (batch,), out.shape
    assert jnp.allclose(out, ref, atol=1e-5, rtol=1e-5), (out, ref)

    # Multi-tile path (B=256 -> two (1,128) lane-dense output blocks, one-hot gather).
    batch2 = 256
    k_uid2, k_iid2 = jax.random.split(jax.random.PRNGKey(1), 2)
    uid2 = jax.random.randint(k_uid2, (batch2,), 0, n_user, dtype=jnp.int32)
    iid2 = jax.random.randint(k_iid2, (batch2,), 0, n_item, dtype=jnp.int32)
    ref2 = jax.nn.sigmoid(jnp.sum(user_emb[uid2] * item_emb[iid2], axis=-1))
    out2 = jax.block_until_ready(mf_forward(uid2, iid2, user_emb, item_emb))
    assert out2.shape == (batch2,), out2.shape
    assert jnp.allclose(out2, ref2, atol=1e-5, rtol=1e-5)

    # Also exercise the large-vocab path (fused + unrolled row gather) by forcing it.
    out3 = jax.block_until_ready(
        mf_forward(uid2, iid2, user_emb, item_emb, onehot_vocab_limit=0))
    assert out3.shape == (batch2,), out3.shape
    assert jnp.allclose(out3, ref2, atol=1e-5, rtol=1e-5)

    print("KERNEL_OK")
</pallas_src>

<mosaic_0001>
module attributes {stable_mosaic.version = 11 : i64} {
  func.func @mf_kernel_onehot(%arg0: i32, %arg1: memref<16x1xi32, #tpu.memory_space<vmem>>, %arg2: memref<16x1xi32, #tpu.memory_space<vmem>>, %arg3: memref<64x128xf32, #tpu.memory_space<vmem>>, %arg4: memref<96x128xf32, #tpu.memory_space<vmem>>, %arg5: memref<1x16xf32, #tpu.memory_space<vmem>>) attributes {dimension_semantics = [#tpu.dimension_semantics<parallel>], iteration_bounds = array<i64: 1>, scalar_prefetch = 0 : i64, scratch_operands = 0 : i64, tpu.core_type = #tpu.core_type<tc>, window_params = [{transform_indices = @transform_0, window_bounds = array<i64: 16, 1>}, {transform_indices = @transform_1, window_bounds = array<i64: 16, 1>}, {pipeline_mode = #tpu.pipeline_mode<synchronous>, transform_indices = @transform_2, window_bounds = array<i64: 64, 128>}, {pipeline_mode = #tpu.pipeline_mode<synchronous>, transform_indices = @transform_3, window_bounds = array<i64: 96, 128>}, {transform_indices = @transform_4, window_bounds = array<i64: 1, 16>}]} {
    %c0 = arith.constant 0 : index
    %c0_0 = arith.constant 0 : index
    %0 = vector.load %arg1[%c0, %c0_0] : memref<16x1xi32, #tpu.memory_space<vmem>>, vector<16x1xi32>
    %c0_1 = arith.constant 0 : index
    %c0_2 = arith.constant 0 : index
    %1 = vector.load %arg2[%c0_1, %c0_2] : memref<16x1xi32, #tpu.memory_space<vmem>>, vector<16x1xi32>
    %2 = tpu.iota {dimensions = array<i32: 1>} : vector<16x64xi32>
    %3 = vector.broadcast %0 : vector<16x1xi32> to vector<16x64xi32>
    %4 = arith.cmpi eq, %2, %3 : vector<16x64xi32>
    %5 = arith.extui %4 : vector<16x64xi1> to vector<16x64xi32>
    %6 = arith.sitofp %5 : vector<16x64xi32> to vector<16x64xf32>
    %7 = tpu.iota {dimensions = array<i32: 1>} : vector<16x96xi32>
    %8 = vector.broadcast %1 : vector<16x1xi32> to vector<16x96xi32>
    %9 = arith.cmpi eq, %7, %8 : vector<16x96xi32>
    %10 = arith.extui %9 : vector<16x96xi1> to vector<16x96xi32>
    %11 = arith.sitofp %10 : vector<16x96xi32> to vector<16x96xf32>
    %c0_3 = arith.constant 0 : index
    %c0_4 = arith.constant 0 : index
    %12 = vector.load %arg3[%c0_3, %c0_4] : memref<64x128xf32, #tpu.memory_space<vmem>>, vector<64x128xf32>
    %cst = arith.constant dense<0.000000e+00> : vector<16x128xf32>
    %13 = tpu.matmul %6, %12, %cst {dimension_numbers = #tpu.dot_dimension_numbers<[1], [0], [0], [1], [0, 0, 1, 1], [], []>, precision = #tpu.contract_precision<fp32>} : vector<16x64xf32>, vector<64x128xf32>, vector<16x128xf32> -> vector<16x128xf32>
    %c0_5 = arith.constant 0 : index
    %c0_6 = arith.constant 0 : index
    %14 = vector.load %arg4[%c0_5, %c0_6] : memref<96x128xf32, #tpu.memory_space<vmem>>, vector<96x128xf32>
    %cst_7 = arith.constant dense<0.000000e+00> : vector<16x128xf32>
    %15 = tpu.matmul %11, %14, %cst_7 {dimension_numbers = #tpu.dot_dimension_numbers<[1], [0], [0], [1], [0, 0, 1, 1], [], []>, precision = #tpu.contract_precision<fp32>} : vector<16x96xf32>, vector<96x128xf32>, vector<16x128xf32> -> vector<16x128xf32>
    %16 = arith.mulf %13, %15 : vector<16x128xf32>
    %cst_8 = arith.constant 1.000000e+00 : f32
    %17 = vector.broadcast %cst_8 : f32 to vector<1x128xf32>
    %cst_9 = arith.constant dense<0.000000e+00> : vector<1x16xf32>
    %18 = tpu.matmul %17, %16, %cst_9 {dimension_numbers = #tpu.dot_dimension_numbers<[1], [1], [0], [0], [0, 0, 1, 0], [], []>} : vector<1x128xf32>, vector<16x128xf32>, vector<1x16xf32> -> vector<1x16xf32>
    %19 = arith.negf %18 : vector<1x16xf32>
    %20 = math.exp %19 : vector<1x16xf32>
    %cst_10 = arith.constant 1.000000e+00 : f32
    %21 = vector.broadcast %cst_10 : f32 to vector<1x16xf32>
    %22 = arith.addf %21, %20 : vector<1x16xf32>
    %23 = arith.divf %21, %22 : vector<1x16xf32>
    %c0_11 = arith.constant 0 : index
    %c0_12 = arith.constant 0 : index
    %24 = vector.load %arg5[%c0_11, %c0_12] : memref<1x16xf32, #tpu.memory_space<vmem>>, vector<1x16xf32>
    tpu.vector_store %arg5[%c0_11, %c0_12], %23 {strides = array<i32>} : memref<1x16xf32, #tpu.memory_space<vmem>>, vector<1x16xf32>,
    return
  }
  func.func @transform_0(%arg0: i32) -> (i32, i32) {
    %c0_i32 = arith.constant 0 : i32
    %c0_i32_0 = arith.constant 0 : i32
    return %arg0, %c0_i32 : i32, i32
  }
  func.func @transform_1(%arg0: i32) -> (i32, i32) {
    %c0_i32 = arith.constant 0 : i32
    %c0_i32_0 = arith.constant 0 : i32
    return %arg0, %c0_i32 : i32, i32
  }
  func.func @transform_2(%arg0: i32) -> (i32, i32) {
    %c0_i32 = arith.constant 0 : i32
    %c0_i32_0 = arith.constant 0 : i32
    %c0_i32_1 = arith.constant 0 : i32
    return %c0_i32, %c0_i32_0 : i32, i32
  }
  func.func @transform_3(%arg0: i32) -> (i32, i32) {
    %c0_i32 = arith.constant 0 : i32
    %c0_i32_0 = arith.constant 0 : i32
    %c0_i32_1 = arith.constant 0 : i32
    return %c0_i32, %c0_i32_0 : i32, i32
  }
  func.func @transform_4(%arg0: i32) -> (i32, i32) {
    %c0_i32 = arith.constant 0 : i32
    %c0_i32_0 = arith.constant 0 : i32
    return %c0_i32, %arg0 : i32, i32
  }
}

</mosaic_0001>

<llo_original>
// kernel: tpu_custom_call.1
$region0: #{tpu_custom_call.1}
  #allocation0 [shape = 'u32[]', space=smem, size = 0x4, offset = 0x4, fixed_abs, tag = 'smem constant byte address 0x4 - core index']
  #allocation1 [shape = 'u32[144,128]{1,0:T(1,128)}', space=vmem, size = 0x12000, scoped, tag = 'internal scratch']
  %s0 = inlined_call_operand.vmem [shape: s32[16,1], index: 0, kind: input, shape index: {}]
  %s1 = inlined_call_operand.vmem [shape: s32[16,1], index: 1, kind: input, shape index: {}]
  %s2 = inlined_call_operand.hbm [shape: f32[64,128], index: 2, kind: input, shape index: {}]
  %s3 = inlined_call_operand.hbm [shape: f32[96,128], index: 3, kind: input, shape index: {}]
  %s4 = inlined_call_operand.hbm [shape: f32[1,16], index: 4, kind: output, shape index: {}]
  %s5 = sld [smem:[#allocation0]]
  $region34: #{tpu_custom_call.1} parent=0
    _
  %s7 = ssub.s32 1, %s5
  %s8 = scalar_select 0, %s7, %s5
  $region1: #{tpu_custom_call.1} parent=0
    #allocation2 [shape = 'u8[32768]{0}', space=vmem, size = 0x8000, scoped, tag = 'input window, operand 2, single buffered']
    #allocation3 [shape = 's32[1]{0}', space=sflag, size = 0x4, scoped, tag = 'scoped memory for tpu_custom_call.1']
    #allocation4 [shape = 's32[1]{0}', space=sflag, size = 0x4, scoped, tag = 'scoped memory for tpu_custom_call.1']
    #allocation5 [shape = 'u8[49152]{0}', space=vmem, size = 0xc000, scoped, tag = 'input window, operand 3, single buffered']
    #allocation6 [shape = 's32[1]{0}', space=sflag, size = 0x4, scoped, tag = 'scoped memory for tpu_custom_call.1']
    #allocation7 [shape = 'u8[512]{0}', space=vmem, size = 0x400, scoped, tag = 'output window, operand 0, single buffered']
    %9 = vsyncpa [#allocation3], 0
    %10 = vsyncpa [#allocation6], 0
    %11 = vsyncpa [#allocation4], 0
    // Predicated region
    $region2: #{tpu_custom_call.1} parent=1 // pred_check
      _
    $region3: #{tpu_custom_call.1} parent=1 // pred_check_branch
      %13 = sbr.rel (0) target = $region5
    $region4: #{tpu_custom_call.1} parent=1 // pred_region
      _
    $region5: #{tpu_custom_call.1} parent=1 // pred_fallthru
      _
    // Predicated region
    $region6: #{tpu_custom_call.1} parent=1 // pred_check
      _
    $region7: #{tpu_custom_call.1} parent=1 // pred_check_branch
      %15 = sbr.rel (0) target = $region9
    $region8: #{tpu_custom_call.1} parent=1 // pred_region
      _
    $region9: #{tpu_custom_call.1} parent=1 // pred_fallthru
      _
    // Predicated region
    $region10: #{tpu_custom_call.1} parent=1 // pred_check
      _
    $region11: #{tpu_custom_call.1} parent=1 // pred_check_branch
      %17 = sbr.rel (0) target = $region13
    $region12: #{tpu_custom_call.1} parent=1 // pred_region
      %s19 = ssub.s32 1024, 1024
      %20 = vsyncadd [#allocation3], %s19
      %s21 = sshll.u32 [#allocation2], 4
      %s22 = int_to_ptr.vmem [resolvable:$true] %s21
      %27 = dma.hbm_to_vmem [thread:$0]  %s2, 1024, %s22, [#allocation3], 128, 128, 8
    $region13: #{tpu_custom_call.1} parent=1 // pred_fallthru
      _
    // Predicated region
    $region14: #{tpu_custom_call.1} parent=1 // pred_check
      _
    $region15: #{tpu_custom_call.1} parent=1 // pred_check_branch
      %29 = sbr.rel (0) target = $region17
    $region16: #{tpu_custom_call.1} parent=1 // pred_region
      %s31 = ssub.s32 1536, 1536
      %32 = vsyncadd [#allocation6], %s31
      %s33 = sshll.u32 [#allocation5], 4
      %s34 = int_to_ptr.vmem [resolvable:$true] %s33
      %39 = dma.hbm_to_vmem [thread:$0]  %s3, 1536, %s34, [#allocation6], 128, 128, 8
    $region17: #{tpu_custom_call.1} parent=1 // pred_fallthru
      _
    // Predicated region
    $region18: #{tpu_custom_call.1} parent=1 // pred_check
      _
    $region19: #{tpu_custom_call.1} parent=1 // pred_check_branch
      %41 = sbr.rel (0) target = $region21
    $region20: #{tpu_custom_call.1} parent=1 // pred_region
      %42 = dma.done [#allocation3], 1024
    $region21: #{tpu_custom_call.1} parent=1 // pred_fallthru
      _
    // Predicated region
    $region22: #{tpu_custom_call.1} parent=1 // pred_check
      _
    $region23: #{tpu_custom_call.1} parent=1 // pred_check_branch
      %44 = sbr.rel (0) target = $region25
    $region24: #{tpu_custom_call.1} parent=1 // pred_region
      %45 = dma.done [#allocation6], 1536
    $region25: #{tpu_custom_call.1} parent=1 // pred_fallthru
      _
    %v46 = vld [vmem:[%s0] sm:$0xff]
    %v47 = vld [vmem:[%s0 + $0x8] sm:$0xff]
    %v48 = vld [vmem:[%s1] sm:$0xff]
    %v49 = vld [vmem:[%s1 + $0x8] sm:$0xff]
    %v50 = vlaneseq
    %v51 = vand.u32 %v50, 127
    %52 = vset.pattern.permute.xlu0 0
    %53 = vperm.xlu0 %52, %v46
    %v54 = vpop.permute.xlu0 %53
    %55 = vset.pattern.permute.xlu0 0
    %56 = vperm.xlu0 %55, %v47
    %v57 = vpop.permute.xlu0 %56
    %vm58 = vcmp.eq.s32.totalorder %v51, %v54
    %vm59 = vcmp.eq.s32.totalorder %v51, %v57
    %v60 = vsel %vm58, 1, 0
    %v61 = vsel %vm59, 1, 0
    %v62 = vcvt.s32.f32 %v60
    %v63 = vcvt.s32.f32 %v61
    %64 = vset.pattern.permute.xlu0 0
    %65 = vperm.xlu0 %64, %v48
    %v66 = vpop.permute.xlu0 %65
    %67 = vset.pattern.permute.xlu0 0
    %68 = vperm.xlu0 %67, %v49
    %v69 = vpop.permute.xlu0 %68
    %vm70 = vcmp.eq.s32.totalorder %v51, %v66
    %vm71 = vcmp.eq.s32.totalorder %v51, %v69
    %v72 = vsel %vm70, 1, 0
    %v73 = vsel %vm71, 1, 0
    %v74 = vcvt.s32.f32 %v72
    %v75 = vcvt.s32.f32 %v73
    %v76 = vld [vmem:[#allocation2] sm:$0xff]
    %v77 = vld [vmem:[#allocation2 + $0x8] sm:$0xff]
    %v78 = vld [vmem:[#allocation2 + $0x10] sm:$0xff]
    %v79 = vld [vmem:[#allocation2 + $0x18] sm:$0xff]
    %v80 = vld [vmem:[#allocation2 + $0x20] sm:$0xff]
    %v81 = vld [vmem:[#allocation2 + $0x28] sm:$0xff]
    %v82 = vld [vmem:[#allocation2 + $0x30] sm:$0xff]
    %v83 = vld [vmem:[#allocation2 + $0x38] sm:$0xff]
    %vm84 = vcmask 523264
    %v86 = vsel %vm84, %v62, 0
    %v89 = vsel %vm84, %v63, 0
    %91 = vmatprep.subr.mxu0 0.0
    %v92 = vand.u32 %v76, 4294901760
    %93 = vmatpush1.msra.mxu0 %v92
    %94 = vmatprep.subr.mxu0 0.0
    %v95 = vand.u32 %v77, 4294901760
    %96 = vmatpush1.msra.mxu0 %v95
    %97 = vmatprep.subr.mxu0 0.0
    %v98 = vand.u32 %v78, 4294901760
    %99 = vmatpush1.msra.mxu0 %v98
    %100 = vmatprep.subr.mxu0 0.0
    %v101 = vand.u32 %v79, 4294901760
    %102 = vmatpush1.msra.mxu0 %v101
    %103 = vmatprep.subr.mxu0 0.0
    %v104 = vand.u32 %v80, 4294901760
    %105 = vmatpush1.msra.mxu0 %v104
    %106 = vmatprep.subr.mxu0 0.0
    %v107 = vand.u32 %v81, 4294901760
    %108 = vmatpush1.msra.mxu0 %v107
    %109 = vmatprep.subr.mxu0 0.0
    %v110 = vand.u32 %v82, 4294901760
    %111 = vmatpush1.msra.mxu0 %v110
    %112 = vmatprep.subr.mxu0 0.0
    %v113 = vand.u32 %v83, 4294901760
    %114 = vmatpush1.msra.mxu0 %v113
    %115 = vmatprep.subr.mxu0 0.0
    %116 = vmatpush1.msra.mxu0 0.0
    %117 = vmatprep.subr.mxu0 0.0
    %118 = vmatpush1.msra.mxu0 0.0
    %119 = vmatprep.subr.mxu0 0.0
    %120 = vmatpush1.msra.mxu0 0.0
    %121 = vmatprep.subr.mxu0 0.0
    %122 = vmatpush1.msra.mxu0 0.0
    %123 = vmatprep.subr.mxu0 0.0
    %124 = vmatpush1.msra.mxu0 0.0
    %125 = vmatprep.subr.mxu0 0.0
    %126 = vmatpush1.msra.mxu0 0.0
    %127 = vmatprep.subr.mxu0 0.0
    %128 = vmatpush1.msra.mxu0 0.0
    %129 = vmatprep.subr.mxu0 0.0
    %130 = vmatpush1.msra.mxu0 0.0
    %131 = vmatprep.subr.mxu0 0.0
    %132 = vmatpush1.msra.mxu0 0.0
    %133 = vmatprep.subr.mxu0 0.0
    %134 = vmatpush1.msra.mxu0 0.0
    %135 = vmatprep.subr.mxu0 0.0
    %136 = vmatpush1.msra.mxu0 0.0
    %137 = vmatprep.subr.mxu0 0.0
    %138 = vmatpush1.msra.mxu0 0.0
    %139 = vmatprep.subr.mxu0 0.0
    %140 = vmatpush1.msra.mxu0 0.0
    %141 = vmatprep.subr.mxu0 0.0
    %142 = vmatpush1.msra.mxu0 0.0
    %143 = vmatprep.subr.mxu0 0.0
    %144 = vmatpush1.msra.mxu0 0.0
    %145 = vmatprep.subr.mxu0 0.0
    %146 = vmatpush1.msra.mxu0 0.0
    %147 = vmatprep.subr.mxu0 0.0
    %148 = vmatpush1.msra.mxu0 0.0
    %149 = vmatprep.subr.mxu0 0.0
    %150 = vmatpush1.msra.mxu0 0.0
    %151 = vmatprep.subr.mxu0 0.0
    %152 = vmatpush1.msra.mxu0 0.0
    %153 = vmatprep.subr.mxu0 0.0
    %154 = vmatpush1.msra.mxu0 0.0
    %155 = vmatprep.subr.mxu0 0.0
    %156 = vmatpush1.msra.mxu0 0.0
    %157 = vmatprep.subr.mxu0 0.0
    %158 = vmatpush1.msra.mxu0 0.0
    %159 = vmatprep.subr.mxu0 0.0
    %160 = vmatpush1.msra.mxu0 0.0
    %161 = vmatprep.subr.mxu0 0.0
    %162 = vmatpush1.msra.mxu0 0.0
    %163 = vmatprep.mubr.f32.mxu0 0.0
    %v164 = vand.u32 %v86, 4294901760
    %v165 = vsub.f32 %v86, %v164
    %v166 = vand.u32 %v165, 4294901760
    %v167 = vsub.f32 %v165, %v166
    %v168 = vand.u32 %v167, 4294901760
    %169 = vmatmul.mubr.f32.gmra.mrb[0].mxu0 %v168
    %v170 = vpop.f32.mrb[0].mxu0
    %v171 = vadd.f32 0.0, %v170
    %v172 = vpop.f32.mrb[0].mxu0
    %173 = vmatprep.mubr.f32.mxu0 0.0
    %v174 = vand.u32 %v89, 4294901760
    %v175 = vsub.f32 %v89, %v174
    %v176 = vand.u32 %v175, 4294901760
    %v177 = vsub.f32 %v175, %v176
    %v178 = vand.u32 %v177, 4294901760
    %179 = vmatmul.mubr.f32.gmra.mrb[0].mxu0 %v178
    %v180 = vpop.f32.mrb[0].mxu0
    %v181 = vadd.f32 0.0, %v180
    %v182 = vpop.f32.mrb[0].mxu0
    %183 = vdwg.mxu0
    %184 = vmatprep.subr.mxu0 0.0
    %v185 = vand.u32 %v76, 4294901760
    %v186 = vsub.f32 %v76, %v185
    %v187 = vand.u32 %v186, 4294901760
    %v188 = vsub.f32 %v186, %v187
    %v189 = vand.u32 %v188, 4294901760
    %190 = vmatpush1.msra.mxu0 %v189
    %191 = vmatprep.subr.mxu0 0.0
    %v192 = vand.u32 %v77, 4294901760
    %v193 = vsub.f32 %v77, %v192
    %v194 = vand.u32 %v193, 4294901760
    %v195 = vsub.f32 %v193, %v194
    %v196 = vand.u32 %v195, 4294901760
    %197 = vmatpush1.msra.mxu0 %v196
    %198 = vmatprep.subr.mxu0 0.0
    %v199 = vand.u32 %v78, 4294901760
    %v200 = vsub.f32 %v78, %v199
    %v201 = vand.u32 %v200, 4294901760
    %v202 = vsub.f32 %v200, %v201
    %v203 = vand.u32 %v202, 4294901760
    %204 = vmatpush1.msra.mxu0 %v203
    %205 = vmatprep.subr.mxu0 0.0
    %v206 = vand.u32 %v79, 4294901760
    %v207 = vsub.f32 %v79, %v206
    %v208 = vand.u32 %v207, 4294901760
    %v209 = vsub.f32 %v207, %v208
    %v210 = vand.u32 %v209, 4294901760
    %211 = vmatpush1.msra.mxu0 %v210
    %212 = vmatprep.subr.mxu0 0.0
    %v213 = vand.u32 %v80, 4294901760
    %v214 = vsub.f32 %v80, %v213
    %v215 = vand.u32 %v214, 4294901760
    %v216 = vsub.f32 %v214, %v215
    %v217 = vand.u32 %v216, 4294901760
    %218 = vmatpush1.msra.mxu0 %v217
    %219 = vmatprep.subr.mxu0 0.0
    %v220 = vand.u32 %v81, 4294901760
    %v221 = vsub.f32 %v81, %v220
    %v222 = vand.u32 %v221, 4294901760
    %v223 = vsub.f32 %v221, %v222
    %v224 = vand.u32 %v223, 4294901760
    %225 = vmatpush1.msra.mxu0 %v224
    %226 = vmatprep.subr.mxu0 0.0
    %v227 = vand.u32 %v82, 4294901760
    %v228 = vsub.f32 %v82, %v227
    %v229 = vand.u32 %v228, 4294901760
    %v230 = vsub.f32 %v228, %v229
    %v231 = vand.u32 %v230, 4294901760
    %232 = vmatpush1.msra.mxu0 %v231
    %233 = vmatprep.subr.mxu0 0.0
    %v234 = vand.u32 %v83, 4294901760
    %v235 = vsub.f32 %v83, %v234
    %v236 = vand.u32 %v235, 4294901760
    %v237 = vsub.f32 %v235, %v236
    %v238 = vand.u32 %v237, 4294901760
    %239 = vmatpush1.msra.mxu0 %v238
    %240 = vmatprep.subr.mxu0 0.0
    %241 = vmatpush1.msra.mxu0 0.0
    %242 = vmatprep.subr.mxu0 0.0
    %243 = vmatpush1.msra.mxu0 0.0
    %244 = vmatprep.subr.mxu0 0.0
    %245 = vmatpush1.msra.mxu0 0.0
    %246 = vmatprep.subr.mxu0 0.0
    %247 = vmatpush1.msra.mxu0 0.0
    %248 = vmatprep.subr.mxu0 0.0
    %249 = vmatpush1.msra.mxu0 0.0
    %250 = vmatprep.subr.mxu0 0.0
    %251 = vmatpush1.msra.mxu0 0.0
    %252 = vmatprep.subr.mxu0 0.0
    %253 = vmatpush1.msra.mxu0 0.0
    %254 = vmatprep.subr.mxu0 0.0
    %255 = vmatpush1.msra.mxu0 0.0
    %256 = vmatprep.subr.mxu0 0.0
    %257 = vmatpush1.msra.mxu0 0.0
    %258 = vmatprep.subr.mxu0 0.0
    %259 = vmatpush1.msra.mxu0 0.0
    %260 = vmatprep.subr.mxu0 0.0
    %261 = vmatpush1.msra.mxu0 0.0
    %262 = vmatprep.subr.mxu0 0.0
    %263 = vmatpush1.msra.mxu0 0.0
    %264 = vmatprep.subr.mxu0 0.0
    %265 = vmatpush1.msra.mxu0 0.0
    %266 = vmatprep.subr.mxu0 0.0
    %267 = vmatpush1.msra.mxu0 0.0
    %268 = vmatprep.subr.mxu0 0.0
    %269 = vmatpush1.msra.mxu0 0.0
    %270 = vmatprep.subr.mxu0 0.0
    %271 = vmatpush1.msra.mxu0 0.0
    %272 = vmatprep.subr.mxu0 0.0
    %273 = vmatpush1.msra.mxu0 0.0
    %274 = vmatprep.subr.mxu0 0.0
    %275 = vmatpush1.msra.mxu0 0.0
    %276 = vmatprep.subr.mxu0 0.0
    %277 = vmatpush1.msra.mxu0 0.0
    %278 = vmatprep.subr.mxu0 0.0
    %279 = vmatpush1.msra.mxu0 0.0
    %280 = vmatprep.subr.mxu0 0.0
    %281 = vmatpush1.msra.mxu0 0.0
    %282 = vmatprep.subr.mxu0 0.0
    %283 = vmatpush1.msra.mxu0 0.0
    %284 = vmatprep.subr.mxu0 0.0
    %285 = vmatpush1.msra.mxu0 0.0
    %286 = vmatprep.subr.mxu0 0.0
    %287 = vmatpush1.msra.mxu0 0.0
    %288 = vmatprep.mubr.f32.mxu0 0.0
    %v289 = vand.u32 %v86, 4294901760
    %290 = vmatmul.mubr.f32.gmra.mrb[0].mxu0 %v289
    %v291 = vpop.f32.mrb[0].mxu0
    %v292 = vadd.f32 %v171, %v291
    %v293 = vpop.f32.mrb[0].mxu0
    %294 = vmatprep.mubr.f32.mxu0 0.0
    %v295 = vand.u32 %v89, 4294901760
    %296 = vmatmul.mubr.f32.gmra.mrb[0].mxu0 %v295
    %v297 = vpop.f32.mrb[0].mxu0
    %v298 = vadd.f32 %v181, %v297
    %v299 = vpop.f32.mrb[0].mxu0
    %300 = vdwg.mxu0
    %301 = vmatprep.subr.mxu0 0.0
    %v302 = vand.u32 %v76, 4294901760
    %v303 = vsub.f32 %v76, %v302
    %304 = vmatpush1.msra.mxu0 %v303
    %305 = vmatprep.subr.mxu0 0.0
    %v306 = vand.u32 %v77, 4294901760
    %v307 = vsub.f32 %v77, %v306
    %308 = vmatpush1.msra.mxu0 %v307
    %309 = vmatprep.subr.mxu0 0.0
    %v310 = vand.u32 %v78, 4294901760
    %v311 = vsub.f32 %v78, %v310
    %312 = vmatpush1.msra.mxu0 %v311
    %313 = vmatprep.subr.mxu0 0.0
    %v314 = vand.u32 %v79, 4294901760
    %v315 = vsub.f32 %v79, %v314
    %316 = vmatpush1.msra.mxu0 %v315
    %317 = vmatprep.subr.mxu0 0.0
    %v318 = vand.u32 %v80, 4294901760
    %v319 = vsub.f32 %v80, %v318
    %320 = vmatpush1.msra.mxu0 %v319
    %321 = vmatprep.subr.mxu0 0.0
    %v322 = vand.u32 %v81, 4294901760
    %v323 = vsub.f32 %v81, %v322
    %324 = vmatpush1.msra.mxu0 %v323
    %325 = vmatprep.subr.mxu0 0.0
    %v326 = vand.u32 %v82, 4294901760
    %v327 = vsub.f32 %v82, %v326
    %328 = vmatpush1.msra.mxu0 %v327
    %329 = vmatprep.subr.mxu0 0.0
    %v330 = vand.u32 %v83, 4294901760
    %v331 = vsub.f32 %v83, %v330
    %332 = vmatpush1.msra.mxu0 %v331
    %333 = vmatprep.subr.mxu0 0.0
    %334 = vmatpush1.msra.mxu0 0.0
    %335 = vmatprep.subr.mxu0 0.0
    %336 = vmatpush1.msra.mxu0 0.0
    %337 = vmatprep.subr.mxu0 0.0
    %338 = vmatpush1.msra.mxu0 0.0
    %339 = vmatprep.subr.mxu0 0.0
    %340 = vmatpush1.msra.mxu0 0.0
    %341 = vmatprep.subr.mxu0 0.0
    %342 = vmatpush1.msra.mxu0 0.0
    %343 = vmatprep.subr.mxu0 0.0
    %344 = vmatpush1.msra.mxu0 0.0
    %345 = vmatprep.subr.mxu0 0.0
    %346 = vmatpush1.msra.mxu0 0.0
    %347 = vmatprep.subr.mxu0 0.0
    %348 = vmatpush1.msra.mxu0 0.0
    %349 = vmatprep.subr.mxu0 0.0
    %350 = vmatpush1.msra.mxu0 0.0
    %351 = vmatprep.subr.mxu0 0.0
    %352 = vmatpush1.msra.mxu0 0.0
    %353 = vmatprep.subr.mxu0 0.0
    %354 = vmatpush1.msra.mxu0 0.0
    %355 = vmatprep.subr.mxu0 0.0
    %356 = vmatpush1.msra.mxu0 0.0
    %357 = vmatprep.subr.mxu0 0.0
    %358 = vmatpush1.msra.mxu0 0.0
    %359 = vmatprep.subr.mxu0 0.0
    %360 = vmatpush1.msra.mxu0 0.0
    %361 = vmatprep.subr.mxu0 0.0
    %362 = vmatpush1.msra.mxu0 0.0
    %363 = vmatprep.subr.mxu0 0.0
    %364 = vmatpush1.msra.mxu0 0.0
    %365 = vmatprep.subr.mxu0 0.0
    %366 = vmatpush1.msra.mxu0 0.0
    %367 = vmatprep.subr.mxu0 0.0
    %368 = vmatpush1.msra.mxu0 0.0
    %369 = vmatprep.subr.mxu0 0.0
    %370 = vmatpush1.msra.mxu0 0.0
    %371 = vmatprep.subr.mxu0 0.0
    %372 = vmatpush1.msra.mxu0 0.0
    %373 = vmatprep.subr.mxu0 0.0
    %374 = vmatpush1.msra.mxu0 0.0
    %375 = vmatprep.subr.mxu0 0.0
    %376 = vmatpush1.msra.mxu0 0.0
    %377 = vmatprep.subr.mxu0 0.0
    %378 = vmatpush1.msra.mxu0 0.0
    %379 = vmatprep.subr.mxu0 0.0
    %380 = vmatpush1.msra.mxu0 0.0
    %381 = vmatprep.mubr.f32.mxu0 0.0
    %v382 = vand.u32 %v86, 4294901760
    %v383 = vsub.f32 %v86, %v382
    %384 = vmatmul.mubr.f32.gmra.mrb[0].mxu0 %v383
    %v385 = vpop.f32.mrb[0].mxu0
    %v386 = vadd.f32 %v292, %v385
    %v387 = vpop.f32.mrb[0].mxu0
    %388 = vmatprep.mubr.f32.mxu0 0.0
    %v389 = vand.u32 %v89, 4294901760
    %v390 = vsub.f32 %v89, %v389
    %391 = vmatmul.mubr.f32.gmra.mrb[0].mxu0 %v390
    %v392 = vpop.f32.mrb[0].mxu0
    %v393 = vadd.f32 %v298, %v392
    %v394 = vpop.f32.mrb[0].mxu0
    %395 = vdwg.mxu0
    %396 = vmatprep.subr.mxu0 0.0
    %v397 = vand.u32 %v76, 4294901760
    %398 = vmatpush1.msra.mxu0 %v397
    %399 = vmatprep.subr.mxu0 0.0
    %v400 = vand.u32 %v77, 4294901760
    %401 = vmatpush1.msra.mxu0 %v400
    %402 = vmatprep.subr.mxu0 0.0
    %v403 = vand.u32 %v78, 4294901760
    %404 = vmatpush1.msra.mxu0 %v403
    %405 = vmatprep.subr.mxu0 0.0
    %v406 = vand.u32 %v79, 4294901760
    %407 = vmatpush1.msra.mxu0 %v406
    %408 = vmatprep.subr.mxu0 0.0
    %v409 = vand.u32 %v80, 4294901760
    %410 = vmatpush1.msra.mxu0 %v409
    %411 = vmatprep.subr.mxu0 0.0
    %v412 = vand.u32 %v81, 4294901760
    %413 = vmatpush1.msra.mxu0 %v412
    %414 = vmatprep.subr.mxu0 0.0
    %v415 = vand.u32 %v82, 4294901760
    %416 = vmatpush1.msra.mxu0 %v415
    %417 = vmatprep.subr.mxu0 0.0
    %v418 = vand.u32 %v83, 4294901760
    %419 = vmatpush1.msra.mxu0 %v418
    %420 = vmatprep.subr.mxu0 0.0
    %421 = vmatpush1.msra.mxu0 0.0
    %422 = vmatprep.subr.mxu0 0.0
    %423 = vmatpush1.msra.mxu0 0.0
    %424 = vmatprep.subr.mxu0 0.0
    %425 = vmatpush1.msra.mxu0 0.0
    %426 = vmatprep.subr.mxu0 0.0
    %427 = vmatpush1.msra.mxu0 0.0
    %428 = vmatprep.subr.mxu0 0.0
    %429 = vmatpush1.msra.mxu0 0.0
    %430 = vmatprep.subr.mxu0 0.0
    %431 = vmatpush1.msra.mxu0 0.0
    %432 = vmatprep.subr.mxu0 0.0
    %433 = vmatpush1.msra.mxu0 0.0
    %434 = vmatprep.subr.mxu0 0.0
    %435 = vmatpush1.msra.mxu0 0.0
    %436 = vmatprep.subr.mxu0 0.0
    %437 = vmatpush1.msra.mxu0 0.0
    %438 = vmatprep.subr.mxu0 0.0
    %439 = vmatpush1.msra.mxu0 0.0
    %440 = vmatprep.subr.mxu0 0.0
    %441 = vmatpush1.msra.mxu0 0.0
    %442 = vmatprep.subr.mxu0 0.0
    %443 = vmatpush1.msra.mxu0 0.0
    %444 = vmatprep.subr.mxu0 0.0
    %445 = vmatpush1.msra.mxu0 0.0
    %446 = vmatprep.subr.mxu0 0.0
    %447 = vmatpush1.msra.mxu0 0.0
    %448 = vmatprep.subr.mxu0 0.0
    %449 = vmatpush1.msra.mxu0 0.0
    %450 = vmatprep.subr.mxu0 0.0
    %451 = vmatpush1.msra.mxu0 0.0
    %452 = vmatprep.subr.mxu0 0.0
    %453 = vmatpush1.msra.mxu0 0.0
    %454 = vmatprep.subr.mxu0 0.0
    %455 = vmatpush1.msra.mxu0 0.0
    %456 = vmatprep.subr.mxu0 0.0
    %457 = vmatpush1.msra.mxu0 0.0
    %458 = vmatprep.subr.mxu0 0.0
    %459 = vmatpush1.msra.mxu0 0.0
    %460 = vmatprep.subr.mxu0 0.0
    %461 = vmatpush1.msra.mxu0 0.0
    %462 = vmatprep.subr.mxu0 0.0
    %463 = vmatpush1.msra.mxu0 0.0
    %464 = vmatprep.subr.mxu0 0.0
    %465 = vmatpush1.msra.mxu0 0.0
    %466 = vmatprep.subr.mxu0 0.0
    %467 = vmatpush1.msra.mxu0 0.0
    %468 = vmatprep.mubr.f32.mxu0 0.0
    %v469 = vand.u32 %v86, 4294901760
    %v470 = vsub.f32 %v86, %v469
    %v471 = vand.u32 %v470, 4294901760
    %472 = vmatmul.mubr.f32.gmra.mrb[0].mxu0 %v471
    %v473 = vpop.f32.mrb[0].mxu0
    %v474 = vadd.f32 %v386, %v473
    %v475 = vpop.f32.mrb[0].mxu0
    %476 = vmatprep.mubr.f32.mxu0 0.0
    %v477 = vand.u32 %v89, 4294901760
    %v478 = vsub.f32 %v89, %v477
    %v479 = vand.u32 %v478, 4294901760
    %480 = vmatmul.mubr.f32.gmra.mrb[0].mxu0 %v479
    %v481 = vpop.f32.mrb[0].mxu0
    %v482 = vadd.f32 %v393, %v481
    %v483 = vpop.f32.mrb[0].mxu0
    %484 = vdwg.mxu0
    %485 = vmatprep.subr.mxu0 0.0
    %v486 = vand.u32 %v76, 4294901760
    %v487 = vsub.f32 %v76, %v486
    %v488 = vand.u32 %v487, 4294901760
    %489 = vmatpush1.msra.mxu0 %v488
    %490 = vmatprep.subr.mxu0 0.0
    %v491 = vand.u32 %v77, 4294901760
    %v492 = vsub.f32 %v77, %v491
    %v493 = vand.u32 %v492, 4294901760
    %494 = vmatpush1.msra.mxu0 %v493
    %495 = vmatprep.subr.mxu0 0.0
    %v496 = vand.u32 %v78, 4294901760
    %v497 = vsub.f32 %v78, %v496
    %v498 = vand.u32 %v497, 4294901760
    %499 = vmatpush1.msra.mxu0 %v498
    %500 = vmatprep.subr.mxu0 0.0
    %v501 = vand.u32 %v79, 4294901760
    %v502 = vsub.f32 %v79, %v501
    %v503 = vand.u32 %v502, 4294901760
    %504 = vmatpush1.msra.mxu0 %v503
    %505 = vmatprep.subr.mxu0 0.0
    %v506 = vand.u32 %v80, 4294901760
    %v507 = vsub.f32 %v80, %v506
    %v508 = vand.u32 %v507, 4294901760
    %509 = vmatpush1.msra.mxu0 %v508
    %510 = vmatprep.subr.mxu0 0.0
    %v511 = vand.u32 %v81, 4294901760
    %v512 = vsub.f32 %v81, %v511
    %v513 = vand.u32 %v512, 4294901760
    %514 = vmatpush1.msra.mxu0 %v513
    %515 = vmatprep.subr.mxu0 0.0
    %v516 = vand.u32 %v82, 4294901760
    %v517 = vsub.f32 %v82, %v516
    %v518 = vand.u32 %v517, 4294901760
    %519 = vmatpush1.msra.mxu0 %v518
    %520 = vmatprep.subr.mxu0 0.0
    %v521 = vand.u32 %v83, 4294901760
    %v522 = vsub.f32 %v83, %v521
    %v523 = vand.u32 %v522, 4294901760
    %524 = vmatpush1.msra.mxu0 %v523
    %525 = vmatprep.subr.mxu0 0.0
    %526 = vmatpush1.msra.mxu0 0.0
    %527 = vmatprep.subr.mxu0 0.0
    %528 = vmatpush1.msra.mxu0 0.0
    %529 = vmatprep.subr.mxu0 0.0
    %530 = vmatpush1.msra.mxu0 0.0
    %531 = vmatprep.subr.mxu0 0.0
    %532 = vmatpush1.msra.mxu0 0.0
    %533 = vmatprep.subr.mxu0 0.0
    %534 = vmatpush1.msra.mxu0 0.0
    %535 = vmatprep.subr.mxu0 0.0
    %536 = vmatpush1.msra.mxu0 0.0
    %537 = vmatprep.subr.mxu0 0.0
    %538 = vmatpush1.msra.mxu0 0.0
    %539 = vmatprep.subr.mxu0 0.0
    %540 = vmatpush1.msra.mxu0 0.0
    %541 = vmatprep.subr.mxu0 0.0
    %542 = vmatpush1.msra.mxu0 0.0
    %543 = vmatprep.subr.mxu0 0.0
    %544 = vmatpush1.msra.mxu0 0.0
    %545 = vmatprep.subr.mxu0 0.0
    %546 = vmatpush1.msra.mxu0 0.0
    %547 = vmatprep.subr.mxu0 0.0
    %548 = vmatpush1.msra.mxu0 0.0
    %549 = vmatprep.subr.mxu0 0.0
    %550 = vmatpush1.msra.mxu0 0.0
    %551 = vmatprep.subr.mxu0 0.0
    %552 = vmatpush1.msra.mxu0 0.0
    %553 = vmatprep.subr.mxu0 0.0
    %554 = vmatpush1.msra.mxu0 0.0
    %555 = vmatprep.subr.mxu0 0.0
    %556 = vmatpush1.msra.mxu0 0.0
    %557 = vmatprep.subr.mxu0 0.0
    %558 = vmatpush1.msra.mxu0 0.0
    %559 = vmatprep.subr.mxu0 0.0
    %560 = vmatpush1.msra.mxu0 0.0
    %561 = vmatprep.subr.mxu0 0.0
    %562 = vmatpush1.msra.mxu0 0.0
    %563 = vmatprep.subr.mxu0 0.0
    %564 = vmatpush1.msra.mxu0 0.0
    %565 = vmatprep.subr.mxu0 0.0
    %566 = vmatpush1.msra.mxu0 0.0
    %567 = vmatprep.subr.mxu0 0.0
    %568 = vmatpush1.msra.mxu0 0.0
    %569 = vmatprep.subr.mxu0 0.0
    %570 = vmatpush1.msra.mxu0 0.0
    %571 = vmatprep.subr.mxu0 0.0
    %572 = vmatpush1.msra.mxu0 0.0
    %573 = vmatprep.mubr.f32.mxu0 0.0
    %v574 = vand.u32 %v86, 4294901760
    %575 = vmatmul.mubr.f32.gmra.mrb[0].mxu0 %v574
    %v576 = vpop.f32.mrb[0].mxu0
    %v577 = vadd.f32 %v474, %v576
    %v578 = vpop.f32.mrb[0].mxu0
    %579 = vmatprep.mubr.f32.mxu0 0.0
    %v580 = vand.u32 %v89, 4294901760
    %581 = vmatmul.mubr.f32.gmra.mrb[0].mxu0 %v580
    %v582 = vpop.f32.mrb[0].mxu0
    %v583 = vadd.f32 %v482, %v582
    %v584 = vpop.f32.mrb[0].mxu0
    %585 = vdwg.mxu0
    %586 = vmatprep.subr.mxu0 0.0
    %v587 = vand.u32 %v76, 4294901760
    %588 = vmatpush1.msra.mxu0 %v587
    %589 = vmatprep.subr.mxu0 0.0
    %v590 = vand.u32 %v77, 4294901760
    %591 = vmatpush1.msra.mxu0 %v590
    %592 = vmatprep.subr.mxu0 0.0
    %v593 = vand.u32 %v78, 4294901760
    %594 = vmatpush1.msra.mxu0 %v593
    %595 = vmatprep.subr.mxu0 0.0
    %v596 = vand.u32 %v79, 4294901760
    %597 = vmatpush1.msra.mxu0 %v596
    %598 = vmatprep.subr.mxu0 0.0
    %v599 = vand.u32 %v80, 4294901760
    %600 = vmatpush1.msra.mxu0 %v599
    %601 = vmatprep.subr.mxu0 0.0
    %v602 = vand.u32 %v81, 4294901760
    %603 = vmatpush1.msra.mxu0 %v602
    %604 = vmatprep.subr.mxu0 0.0
    %v605 = vand.u32 %v82, 4294901760
    %606 = vmatpush1.msra.mxu0 %v605
    %607 = vmatprep.subr.mxu0 0.0
    %v608 = vand.u32 %v83, 4294901760
    %609 = vmatpush1.msra.mxu0 %v608
    %610 = vmatprep.subr.mxu0 0.0
    %611 = vmatpush1.msra.mxu0 0.0
    %612 = vmatprep.subr.mxu0 0.0
    %613 = vmatpush1.msra.mxu0 0.0
    %614 = vmatprep.subr.mxu0 0.0
    %615 = vmatpush1.msra.mxu0 0.0
    %616 = vmatprep.subr.mxu0 0.0
    %617 = vmatpush1.msra.mxu0 0.0
    %618 = vmatprep.subr.mxu0 0.0
    %619 = vmatpush1.msra.mxu0 0.0
    %620 = vmatprep.subr.mxu0 0.0
    %621 = vmatpush1.msra.mxu0 0.0
    %622 = vmatprep.subr.mxu0 0.0
    %623 = vmatpush1.msra.mxu0 0.0
    %624 = vmatprep.subr.mxu0 0.0
    %625 = vmatpush1.msra.mxu0 0.0
    %626 = vmatprep.subr.mxu0 0.0
    %627 = vmatpush1.msra.mxu0 0.0
    %628 = vmatprep.subr.mxu0 0.0
    %629 = vmatpush1.msra.mxu0 0.0
    %630 = vmatprep.subr.mxu0 0.0
    %631 = vmatpush1.msra.mxu0 0.0
    %632 = vmatprep.subr.mxu0 0.0
    %633 = vmatpush1.msra.mxu0 0.0
    %634 = vmatprep.subr.mxu0 0.0
    %635 = vmatpush1.msra.mxu0 0.0
    %636 = vmatprep.subr.mxu0 0.0
    %637 = vmatpush1.msra.mxu0 0.0
    %638 = vmatprep.subr.mxu0 0.0
    %639 = vmatpush1.msra.mxu0 0.0
    %640 = vmatprep.subr.mxu0 0.0
    %641 = vmatpush1.msra.mxu0 0.0
    %642 = vmatprep.subr.mxu0 0.0
    %643 = vmatpush1.msra.mxu0 0.0
    %644 = vmatprep.subr.mxu0 0.0
    %645 = vmatpush1.msra.mxu0 0.0
    %646 = vmatprep.subr.mxu0 0.0
    %647 = vmatpush1.msra.mxu0 0.0
    %648 = vmatprep.subr.mxu0 0.0
    %649 = vmatpush1.msra.mxu0 0.0
    %650 = vmatprep.subr.mxu0 0.0
    %651 = vmatpush1.msra.mxu0 0.0
    %652 = vmatprep.subr.mxu0 0.0
    %653 = vmatpush1.msra.mxu0 0.0
    %654 = vmatprep.subr.mxu0 0.0
    %655 = vmatpush1.msra.mxu0 0.0
    %656 = vmatprep.subr.mxu0 0.0
    %657 = vmatpush1.msra.mxu0 0.0
    %658 = vmatprep.mubr.f32.mxu0 0.0
    %v659 = vand.u32 %v86, 4294901760
    %660 = vmatmul.mubr.f32.gmra.mrb[0].mxu0 %v659
    %v661 = vpop.f32.mrb[0].mxu0
    %v662 = vadd.f32 %v577, %v661
    %v663 = vpop.f32.mrb[0].mxu0
    %664 = vmatprep.mubr.f32.mxu0 0.0
    %v665 = vand.u32 %v89, 4294901760
    %666 = vmatmul.mubr.f32.gmra.mrb[0].mxu0 %v665
    %v667 = vpop.f32.mrb[0].mxu0
    %v668 = vadd.f32 %v583, %v667
    %v669 = vpop.f32.mrb[0].mxu0
    %670 = vdwg.mxu0
    %v671 = vld [vmem:[#allocation5] sm:$0xff]
    %v672 = vld [vmem:[#allocation5 + $0x8] sm:$0xff]
    %v673 = vld [vmem:[#allocation5 + $0x10] sm:$0xff]
    %v674 = vld [vmem:[#allocation5 + $0x18] sm:$0xff]
    %v675 = vld [vmem:[#allocation5 + $0x20] sm:$0xff]
    %v676 = vld [vmem:[#allocation5 + $0x28] sm:$0xff]
    %v677 = vld [vmem:[#allocation5 + $0x30] sm:$0xff]
    %v678 = vld [vmem:[#allocation5 + $0x38] sm:$0xff]
    %v679 = vld [vmem:[#allocation5 + $0x40] sm:$0xff]
    %v680 = vld [vmem:[#allocation5 + $0x48] sm:$0xff]
    %v681 = vld [vmem:[#allocation5 + $0x50] sm:$0xff]
    %v682 = vld [vmem:[#allocation5 + $0x58] sm:$0xff]
    %vm683 = vcmask 785408
    %v685 = vsel %vm683, %v74, 0
    %v688 = vsel %vm683, %v75, 0
    %690 = vmatprep.subr.mxu0 0.0
    %v691 = vand.u32 %v671, 4294901760
    %692 = vmatpush1.msra.mxu0 %v691
    %693 = vmatprep.subr.mxu0 0.0
    %v694 = vand.u32 %v672, 4294901760
    %695 = vmatpush1.msra.mxu0 %v694
    %696 = vmatprep.subr.mxu0 0.0
    %v697 = vand.u32 %v673, 4294901760
    %698 = vmatpush1.msra.mxu0 %v697
    %699 = vmatprep.subr.mxu0 0.0
    %v700 = vand.u32 %v674, 4294901760
    %701 = vmatpush1.msra.mxu0 %v700
    %702 = vmatprep.subr.mxu0 0.0
    %v703 = vand.u32 %v675, 4294901760
    %704 = vmatpush1.msra.mxu0 %v703
    %705 = vmatprep.subr.mxu0 0.0
    %v706 = vand.u32 %v676, 4294901760
    %707 = vmatpush1.msra.mxu0 %v706
    %708 = vmatprep.subr.mxu0 0.0
    %v709 = vand.u32 %v677, 4294901760
    %710 = vmatpush1.msra.mxu0 %v709
    %711 = vmatprep.subr.mxu0 0.0
    %v712 = vand.u32 %v678, 4294901760
    %713 = vmatpush1.msra.mxu0 %v712
    %714 = vmatprep.subr.mxu0 0.0
    %v715 = vand.u32 %v679, 4294901760
    %716 = vmatpush1.msra.mxu0 %v715
    %717 = vmatprep.subr.mxu0 0.0
    %v718 = vand.u32 %v680, 4294901760
    %719 = vmatpush1.msra.mxu0 %v718
    %720 = vmatprep.subr.mxu0 0.0
    %v721 = vand.u32 %v681, 4294901760
    %722 = vmatpush1.msra.mxu0 %v721
    %723 = vmatprep.subr.mxu0 0.0
    %v724 = vand.u32 %v682, 4294901760
    %725 = vmatpush1.msra.mxu0 %v724
    %726 = vmatprep.subr.mxu0 0.0
    %727 = vmatpush1.msra.mxu0 0.0
    %728 = vmatprep.subr.mxu0 0.0
    %729 = vmatpush1.msra.mxu0 0.0
    %730 = vmatprep.subr.mxu0 0.0
    %731 = vmatpush1.msra.mxu0 0.0
    %732 = vmatprep.subr.mxu0 0.0
    %733 = vmatpush1.msra.mxu0 0.0
    %734 = vmatprep.subr.mxu0 0.0
    %735 = vmatpush1.msra.mxu0 0.0
    %736 = vmatprep.subr.mxu0 0.0
    %737 = vmatpush1.msra.mxu0 0.0
    %738 = vmatprep.subr.mxu0 0.0
    %739 = vmatpush1.msra.mxu0 0.0
    %740 = vmatprep.subr.mxu0 0.0
    %741 = vmatpush1.msra.mxu0 0.0
    %742 = vmatprep.subr.mxu0 0.0
    %743 = vmatpush1.msra.mxu0 0.0
    %744 = vmatprep.subr.mxu0 0.0
    %745 = vmatpush1.msra.mxu0 0.0
    %746 = vmatprep.subr.mxu0 0.0
    %747 = vmatpush1.msra.mxu0 0.0
    %748 = vmatprep.subr.mxu0 0.0
    %749 = vmatpush1.msra.mxu0 0.0
    %750 = vmatprep.subr.mxu0 0.0
    %751 = vmatpush1.msra.mxu0 0.0
    %752 = vmatprep.subr.mxu0 0.0
    %753 = vmatpush1.msra.mxu0 0.0
    %754 = vmatprep.subr.mxu0 0.0
    %755 = vmatpush1.msra.mxu0 0.0
    %756 = vmatprep.subr.mxu0 0.0
    %757 = vmatpush1.msra.mxu0 0.0
    %758 = vmatprep.subr.mxu0 0.0
    %759 = vmatpush1.msra.mxu0 0.0
    %760 = vmatprep.subr.mxu0 0.0
    %761 = vmatpush1.msra.mxu0 0.0
    %762 = vmatprep.subr.mxu0 0.0
    %763 = vmatpush1.msra.mxu0 0.0
    %764 = vmatprep.subr.mxu0 0.0
    %765 = vmatpush1.msra.mxu0 0.0
    %766 = vmatprep.mubr.f32.mxu0 0.0
    %v767 = vand.u32 %v685, 4294901760
    %v768 = vsub.f32 %v685, %v767
    %v769 = vand.u32 %v768, 4294901760
    %v770 = vsub.f32 %v768, %v769
    %v771 = vand.u32 %v770, 4294901760
    %772 = vmatmul.mubr.f32.gmra.mrb[0].mxu0 %v771
    %v773 = vpop.f32.mrb[0].mxu0
    %v774 = vadd.f32 0.0, %v773
    %v775 = vpop.f32.mrb[0].mxu0
    %776 = vmatprep.mubr.f32.mxu0 0.0
    %v777 = vand.u32 %v688, 4294901760
    %v778 = vsub.f32 %v688, %v777
    %v779 = vand.u32 %v778, 4294901760
    %v780 = vsub.f32 %v778, %v779
    %v781 = vand.u32 %v780, 4294901760
    %782 = vmatmul.mubr.f32.gmra.mrb[0].mxu0 %v781
    %v783 = vpop.f32.mrb[0].mxu0
    %v784 = vadd.f32 0.0, %v783
    %v785 = vpop.f32.mrb[0].mxu0
    %786 = vdwg.mxu0
    %787 = vmatprep.subr.mxu0 0.0
    %v788 = vand.u32 %v671, 4294901760
    %v789 = vsub.f32 %v671, %v788
    %v790 = vand.u32 %v789, 4294901760
    %v791 = vsub.f32 %v789, %v790
    %v792 = vand.u32 %v791, 4294901760
    %793 = vmatpush1.msra.mxu0 %v792
    %794 = vmatprep.subr.mxu0 0.0
    %v795 = vand.u32 %v672, 4294901760
    %v796 = vsub.f32 %v672, %v795
    %v797 = vand.u32 %v796, 4294901760
    %v798 = vsub.f32 %v796, %v797
    %v799 = vand.u32 %v798, 4294901760
    %800 = vmatpush1.msra.mxu0 %v799
    %801 = vmatprep.subr.mxu0 0.0
    %v802 = vand.u32 %v673, 4294901760
    %v803 = vsub.f32 %v673, %v802
    %v804 = vand.u32 %v803, 4294901760
    %v805 = vsub.f32 %v803, %v804
    %v806 = vand.u32 %v805, 4294901760
    %807 = vmatpush1.msra.mxu0 %v806
    %808 = vmatprep.subr.mxu0 0.0
    %v809 = vand.u32 %v674, 4294901760
    %v810 = vsub.f32 %v674, %v809
    %v811 = vand.u32 %v810, 4294901760
    %v812 = vsub.f32 %v810, %v811
    %v813 = vand.u32 %v812, 4294901760
    %814 = vmatpush1.msra.mxu0 %v813
    %815 = vmatprep.subr.mxu0 0.0
    %v816 = vand.u32 %v675, 4294901760
    %v817 = vsub.f32 %v675, %v816
    %v818 = vand.u32 %v817, 4294901760
    %v819 = vsub.f32 %v817, %v818
    %v820 = vand.u32 %v819, 4294901760
    %821 = vmatpush1.msra.mxu0 %v820
    %822 = vmatprep.subr.mxu0 0.0
    %v823 = vand.u32 %v676, 4294901760
    %v824 = vsub.f32 %v676, %v823
    %v825 = vand.u32 %v824, 4294901760
    %v826 = vsub.f32 %v824, %v825
    %v827 = vand.u32 %v826, 4294901760
    %828 = vmatpush1.msra.mxu0 %v827
    %829 = vmatprep.subr.mxu0 0.0
    %v830 = vand.u32 %v677, 4294901760
    %v831 = vsub.f32 %v677, %v830
    %v832 = vand.u32 %v831, 4294901760
    %v833 = vsub.f32 %v831, %v832
    %v834 = vand.u32 %v833, 4294901760
    %835 = vmatpush1.msra.mxu0 %v834
    %836 = vmatprep.subr.mxu0 0.0
    %v837 = vand.u32 %v678, 4294901760
    %v838 = vsub.f32 %v678, %v837
    %v839 = vand.u32 %v838, 4294901760
    %v840 = vsub.f32 %v838, %v839
    %v841 = vand.u32 %v840, 4294901760
    %842 = vmatpush1.msra.mxu0 %v841
    %843 = vmatprep.subr.mxu0 0.0
    %v844 = vand.u32 %v679, 4294901760
    %v845 = vsub.f32 %v679, %v844
    %v846 = vand.u32 %v845, 4294901760
    %v847 = vsub.f32 %v845, %v846
    %v848 = vand.u32 %v847, 4294901760
    %849 = vmatpush1.msra.mxu0 %v848
    %850 = vmatprep.subr.mxu0 0.0
    %v851 = vand.u32 %v680, 4294901760
    %v852 = vsub.f32 %v680, %v851
    %v853 = vand.u32 %v852, 4294901760
    %v854 = vsub.f32 %v852, %v853
    %v855 = vand.u32 %v854, 4294901760
    %856 = vmatpush1.msra.mxu0 %v855
    %857 = vmatprep.subr.mxu0 0.0
    %v858 = vand.u32 %v681, 4294901760
    %v859 = vsub.f32 %v681, %v858
    %v860 = vand.u32 %v859, 4294901760
    %v861 = vsub.f32 %v859, %v860
    %v862 = vand.u32 %v861, 4294901760
    %863 = vmatpush1.msra.mxu0 %v862
    %864 = vmatprep.subr.mxu0 0.0
    %v865 = vand.u32 %v682, 4294901760
    %v866 = vsub.f32 %v682, %v865
    %v867 = vand.u32 %v866, 4294901760
    %v868 = vsub.f32 %v866, %v867
    %v869 = vand.u32 %v868, 4294901760
    %870 = vmatpush1.msra.mxu0 %v869
    %871 = vmatprep.subr.mxu0 0.0
    %872 = vmatpush1.msra.mxu0 0.0
    %873 = vmatprep.subr.mxu0 0.0
    %874 = vmatpush1.msra.mxu0 0.0
    %875 = vmatprep.subr.mxu0 0.0
    %876 = vmatpush1.msra.mxu0 0.0
    %877 = vmatprep.subr.mxu0 0.0
    %878 = vmatpush1.msra.mxu0 0.0
    %879 = vmatprep.subr.mxu0 0.0
    %880 = vmatpush1.msra.mxu0 0.0
    %881 = vmatprep.subr.mxu0 0.0
    %882 = vmatpush1.msra.mxu0 0.0
    %883 = vmatprep.subr.mxu0 0.0
    %884 = vmatpush1.msra.mxu0 0.0
    %885 = vmatprep.subr.mxu0 0.0
    %886 = vmatpush1.msra.mxu0 0.0
    %887 = vmatprep.subr.mxu0 0.0
    %888 = vmatpush1.msra.mxu0 0.0
    %889 = vmatprep.subr.mxu0 0.0
    %890 = vmatpush1.msra.mxu0 0.0
    %891 = vmatprep.subr.mxu0 0.0
    %892 = vmatpush1.msra.mxu0 0.0
    %893 = vmatprep.subr.mxu0 0.0
    %894 = vmatpush1.msra.mxu0 0.0
    %895 = vmatprep.subr.mxu0 0.0
    %896 = vmatpush1.msra.mxu0 0.0
    %897 = vmatprep.subr.mxu0 0.0
    %898 = vmatpush1.msra.mxu0 0.0
    %899 = vmatprep.subr.mxu0 0.0
    %900 = vmatpush1.msra.mxu0 0.0
    %901 = vmatprep.subr.mxu0 0.0
    %902 = vmatpush1.msra.mxu0 0.0
    %903 = vmatprep.subr.mxu0 0.0
    %904 = vmatpush1.msra.mxu0 0.0
    %905 = vmatprep.subr.mxu0 0.0
    %906 = vmatpush1.msra.mxu0 0.0
    %907 = vmatprep.subr.mxu0 0.0
    %908 = vmatpush1.msra.mxu0 0.0
    %909 = vmatprep.subr.mxu0 0.0
    %910 = vmatpush1.msra.mxu0 0.0
    %911 = vmatprep.mubr.f32.mxu0 0.0
    %v912 = vand.u32 %v685, 4294901760
    %913 = vmatmul.mubr.f32.gmra.mrb[0].mxu0 %v912
    %v914 = vpop.f32.mrb[0].mxu0
    %v915 = vadd.f32 %v774, %v914
    %v916 = vpop.f32.mrb[0].mxu0
    %917 = vmatprep.mubr.f32.mxu0 0.0
    %v918 = vand.u32 %v688, 4294901760
    %919 = vmatmul.mubr.f32.gmra.mrb[0].mxu0 %v918
    %v920 = vpop.f32.mrb[0].mxu0
    %v921 = vadd.f32 %v784, %v920
    %v922 = vpop.f32.mrb[0].mxu0
    %923 = vdwg.mxu0
    %924 = vmatprep.subr.mxu0 0.0
    %v925 = vand.u32 %v671, 4294901760
    %v926 = vsub.f32 %v671, %v925
    %927 = vmatpush1.msra.mxu0 %v926
    %928 = vmatprep.subr.mxu0 0.0
    %v929 = vand.u32 %v672, 4294901760
    %v930 = vsub.f32 %v672, %v929
    %931 = vmatpush1.msra.mxu0 %v930
    %932 = vmatprep.subr.mxu0 0.0
    %v933 = vand.u32 %v673, 4294901760
    %v934 = vsub.f32 %v673, %v933
    %935 = vmatpush1.msra.mxu0 %v934
    %936 = vmatprep.subr.mxu0 0.0
    %v937 = vand.u32 %v674, 4294901760
    %v938 = vsub.f32 %v674, %v937
    %939 = vmatpush1.msra.mxu0 %v938
    %940 = vmatprep.subr.mxu0 0.0
    %v941 = vand.u32 %v675, 4294901760
    %v942 = vsub.f32 %v675, %v941
    %943 = vmatpush1.msra.mxu0 %v942
    %944 = vmatprep.subr.mxu0 0.0
    %v945 = vand.u32 %v676, 4294901760
    %v946 = vsub.f32 %v676, %v945
    %947 = vmatpush1.msra.mxu0 %v946
    %948 = vmatprep.subr.mxu0 0.0
    %v949 = vand.u32 %v677, 4294901760
    %v950 = vsub.f32 %v677, %v949
    %951 = vmatpush1.msra.mxu0 %v950
    %952 = vmatprep.subr.mxu0 0.0
    %v953 = vand.u32 %v678, 4294901760
    %v954 = vsub.f32 %v678, %v953
    %955 = vmatpush1.msra.mxu0 %v954
    %956 = vmatprep.subr.mxu0 0.0
    %v957 = vand.u32 %v679, 4294901760
    %v958 = vsub.f32 %v679, %v957
    %959 = vmatpush1.msra.mxu0 %v958
    %960 = vmatprep.subr.mxu0 0.0
    %v961 = vand.u32 %v680, 4294901760
    %v962 = vsub.f32 %v680, %v961
    %963 = vmatpush1.msra.mxu0 %v962
    %964 = vmatprep.subr.mxu0 0.0
    %v965 = vand.u32 %v681, 4294901760
    %v966 = vsub.f32 %v681, %v965
    %967 = vmatpush1.msra.mxu0 %v966
    %968 = vmatprep.subr.mxu0 0.0
    %v969 = vand.u32 %v682, 4294901760
    %v970 = vsub.f32 %v682, %v969
    %971 = vmatpush1.msra.mxu0 %v970
    %972 = vmatprep.subr.mxu0 0.0
    %973 = vmatpush1.msra.mxu0 0.0
    %974 = vmatprep.subr.mxu0 0.0
    %975 = vmatpush1.msra.mxu0 0.0
    %976 = vmatprep.subr.mxu0 0.0
    %977 = vmatpush1.msra.mxu0 0.0
    %978 = vmatprep.subr.mxu0 0.0
    %979 = vmatpush1.msra.mxu0 0.0
    %980 = vmatprep.subr.mxu0 0.0
    %981 = vmatpush1.msra.mxu0 0.0
    %982 = vmatprep.subr.mxu0 0.0
    %983 = vmatpush1.msra.mxu0 0.0
    %984 = vmatprep.subr.mxu0 0.0
    %985 = vmatpush1.msra.mxu0 0.0
    %986 = vmatprep.subr.mxu0 0.0
    %987 = vmatpush1.msra.mxu0 0.0
    %988 = vmatprep.subr.mxu0 0.0
    %989 = vmatpush1.msra.mxu0 0.0
    %990 = vmatprep.subr.mxu0 0.0
    %991 = vmatpush1.msra.mxu0 0.0
    %992 = vmatprep.subr.mxu0 0.0
    %993 = vmatpush1.msra.mxu0 0.0
    %994 = vmatprep.subr.mxu0 0.0
    %995 = vmatpush1.msra.mxu0 0.0
    %996 = vmatprep.subr.mxu0 0.0
    %997 = vmatpush1.msra.mxu0 0.0
    %998 = vmatprep.subr.mxu0 0.0
    %999 = vmatpush1.msra.mxu0 0.0
    %1000 = vmatprep.subr.mxu0 0.0
    %1001 = vmatpush1.msra.mxu0 0.0
    %1002 = vmatprep.subr.mxu0 0.0
    %1003 = vmatpush1.msra.mxu0 0.0
    %1004 = vmatprep.subr.mxu0 0.0
    %1005 = vmatpush1.msra.mxu0 0.0
    %1006 = vmatprep.subr.mxu0 0.0
    %1007 = vmatpush1.msra.mxu0 0.0
    %1008 = vmatprep.subr.mxu0 0.0
    %1009 = vmatpush1.msra.mxu0 0.0
    %1010 = vmatprep.subr.mxu0 0.0
    %1011 = vmatpush1.msra.mxu0 0.0
    %1012 = vmatprep.mubr.f32.mxu0 0.0
    %v1013 = vand.u32 %v685, 4294901760
    %v1014 = vsub.f32 %v685, %v1013
    %1015 = vmatmul.mubr.f32.gmra.mrb[0].mxu0 %v1014
    %v1016 = vpop.f32.mrb[0].mxu0
    %v1017 = vadd.f32 %v915, %v1016
    %v1018 = vpop.f32.mrb[0].mxu0
    %1019 = vmatprep.mubr.f32.mxu0 0.0
    %v1020 = vand.u32 %v688, 4294901760
    %v1021 = vsub.f32 %v688, %v1020
    %1022 = vmatmul.mubr.f32.gmra.mrb[0].mxu0 %v1021
    %v1023 = vpop.f32.mrb[0].mxu0
    %v1024 = vadd.f32 %v921, %v1023
    %v1025 = vpop.f32.mrb[0].mxu0
    %1026 = vdwg.mxu0
    %1027 = vmatprep.subr.mxu0 0.0
    %v1028 = vand.u32 %v671, 4294901760
    %1029 = vmatpush1.msra.mxu0 %v1028
    %1030 = vmatprep.subr.mxu0 0.0
    %v1031 = vand.u32 %v672, 4294901760
    %1032 = vmatpush1.msra.mxu0 %v1031
    %1033 = vmatprep.subr.mxu0 0.0
    %v1034 = vand.u32 %v673, 4294901760
    %1035 = vmatpush1.msra.mxu0 %v1034
    %1036 = vmatprep.subr.mxu0 0.0
    %v1037 = vand.u32 %v674, 4294901760
    %1038 = vmatpush1.msra.mxu0 %v1037
    %1039 = vmatprep.subr.mxu0 0.0
    %v1040 = vand.u32 %v675, 4294901760
    %1041 = vmatpush1.msra.mxu0 %v1040
    %1042 = vmatprep.subr.mxu0 0.0
    %v1043 = vand.u32 %v676, 4294901760
    %1044 = vmatpush1.msra.mxu0 %v1043
    %1045 = vmatprep.subr.mxu0 0.0
    %v1046 = vand.u32 %v677, 4294901760
    %1047 = vmatpush1.msra.mxu0 %v1046
    %1048 = vmatprep.subr.mxu0 0.0
    %v1049 = vand.u32 %v678, 4294901760
    %1050 = vmatpush1.msra.mxu0 %v1049
    %1051 = vmatprep.subr.mxu0 0.0
    %v1052 = vand.u32 %v679, 4294901760
    %1053 = vmatpush1.msra.mxu0 %v1052
    %1054 = vmatprep.subr.mxu0 0.0
    %v1055 = vand.u32 %v680, 4294901760
    %1056 = vmatpush1.msra.mxu0 %v1055
    %1057 = vmatprep.subr.mxu0 0.0
    %v1058 = vand.u32 %v681, 4294901760
    %1059 = vmatpush1.msra.mxu0 %v1058
    %1060 = vmatprep.subr.mxu0 0.0
    %v1061 = vand.u32 %v682, 4294901760
    %1062 = vmatpush1.msra.mxu0 %v1061
    %1063 = vmatprep.subr.mxu0 0.0
    %1064 = vmatpush1.msra.mxu0 0.0
    %1065 = vmatprep.subr.mxu0 0.0
    %1066 = vmatpush1.msra.mxu0 0.0
    %1067 = vmatprep.subr.mxu0 0.0
    %1068 = vmatpush1.msra.mxu0 0.0
    %1069 = vmatprep.subr.mxu0 0.0
    %1070 = vmatpush1.msra.mxu0 0.0
    %1071 = vmatprep.subr.mxu0 0.0
    %1072 = vmatpush1.msra.mxu0 0.0
    %1073 = vmatprep.subr.mxu0 0.0
    %1074 = vmatpush1.msra.mxu0 0.0
    %1075 = vmatprep.subr.mxu0 0.0
    %1076 = vmatpush1.msra.mxu0 0.0
    %1077 = vmatprep.subr.mxu0 0.0
    %1078 = vmatpush1.msra.mxu0 0.0
    %1079 = vmatprep.subr.mxu0 0.0
    %1080 = vmatpush1.msra.mxu0 0.0
    %1081 = vmatprep.subr.mxu0 0.0
    %1082 = vmatpush1.msra.mxu0 0.0
    %1083 = vmatprep.subr.mxu0 0.0
    %1084 = vmatpush1.msra.mxu0 0.0
    %1085 = vmatprep.subr.mxu0 0.0
    %1086 = vmatpush1.msra.mxu0 0.0
    %1087 = vmatprep.subr.mxu0 0.0
    %1088 = vmatpush1.msra.mxu0 0.0
    %1089 = vmatprep.subr.mxu0 0.0
    %1090 = vmatpush1.msra.mxu0 0.0
    %1091 = vmatprep.subr.mxu0 0.0
    %1092 = vmatpush1.msra.mxu0 0.0
    %1093 = vmatprep.subr.mxu0 0.0
    %1094 = vmatpush1.msra.mxu0 0.0
    %1095 = vmatprep.subr.mxu0 0.0
    %1096 = vmatpush1.msra.mxu0 0.0
    %1097 = vmatprep.subr.mxu0 0.0
    %1098 = vmatpush1.msra.mxu0 0.0
    %1099 = vmatprep.subr.mxu0 0.0
    %1100 = vmatpush1.msra.mxu0 0.0
    %1101 = vmatprep.subr.mxu0 0.0
    %1102 = vmatpush1.msra.mxu0 0.0
    %1103 = vmatprep.mubr.f32.mxu0 0.0
    %v1104 = vand.u32 %v685, 4294901760
    %v1105 = vsub.f32 %v685, %v1104
    %v1106 = vand.u32 %v1105, 4294901760
    %1107 = vmatmul.mubr.f32.gmra.mrb[0].mxu0 %v1106
    %v1108 = vpop.f32.mrb[0].mxu0
    %v1109 = vadd.f32 %v1017, %v1108
    %v1110 = vpop.f32.mrb[0].mxu0
    %1111 = vmatprep.mubr.f32.mxu0 0.0
    %v1112 = vand.u32 %v688, 4294901760
    %v1113 = vsub.f32 %v688, %v1112
    %v1114 = vand.u32 %v1113, 4294901760
    %1115 = vmatmul.mubr.f32.gmra.mrb[0].mxu0 %v1114
    %v1116 = vpop.f32.mrb[0].mxu0
    %v1117 = vadd.f32 %v1024, %v1116
    %v1118 = vpop.f32.mrb[0].mxu0
    %1119 = vdwg.mxu0
    %1120 = vmatprep.subr.mxu0 0.0
    %v1121 = vand.u32 %v671, 4294901760
    %v1122 = vsub.f32 %v671, %v1121
    %v1123 = vand.u32 %v1122, 4294901760
    %1124 = vmatpush1.msra.mxu0 %v1123
    %1125 = vmatprep.subr.mxu0 0.0
    %v1126 = vand.u32 %v672, 4294901760
    %v1127 = vsub.f32 %v672, %v1126
    %v1128 = vand.u32 %v1127, 4294901760
    %1129 = vmatpush1.msra.mxu0 %v1128
    %1130 = vmatprep.subr.mxu0 0.0
    %v1131 = vand.u32 %v673, 4294901760
    %v1132 = vsub.f32 %v673, %v1131
    %v1133 = vand.u32 %v1132, 4294901760
    %1134 = vmatpush1.msra.mxu0 %v1133
    %1135 = vmatprep.subr.mxu0 0.0
    %v1136 = vand.u32 %v674, 4294901760
    %v1137 = vsub.f32 %v674, %v1136
    %v1138 = vand.u32 %v1137, 4294901760
    %1139 = vmatpush1.msra.mxu0 %v1138
    %1140 = vmatprep.subr.mxu0 0.0
    %v1141 = vand.u32 %v675, 4294901760
    %v1142 = vsub.f32 %v675, %v1141
    %v1143 = vand.u32 %v1142, 4294901760
    %1144 = vmatpush1.msra.mxu0 %v1143
    %1145 = vmatprep.subr.mxu0 0.0
    %v1146 = vand.u32 %v676, 4294901760
    %v1147 = vsub.f32 %v676, %v1146
    %v1148 = vand.u32 %v1147, 4294901760
    %1149 = vmatpush1.msra.mxu0 %v1148
    %1150 = vmatprep.subr.mxu0 0.0
    %v1151 = vand.u32 %v677, 4294901760
    %v1152 = vsub.f32 %v677, %v1151
    %v1153 = vand.u32 %v1152, 4294901760
    %1154 = vmatpush1.msra.mxu0 %v1153
    %1155 = vmatprep.subr.mxu0 0.0
    %v1156 = vand.u32 %v678, 4294901760
    %v1157 = vsub.f32 %v678, %v1156
    %v1158 = vand.u32 %v1157, 4294901760
    %1159 = vmatpush1.msra.mxu0 %v1158
    %1160 = vmatprep.subr.mxu0 0.0
    %v1161 = vand.u32 %v679, 4294901760
    %v1162 = vsub.f32 %v679, %v1161
    %v1163 = vand.u32 %v1162, 4294901760
    %1164 = vmatpush1.msra.mxu0 %v1163
    %1165 = vmatprep.subr.mxu0 0.0
    %v1166 = vand.u32 %v680, 4294901760
    %v1167 = vsub.f32 %v680, %v1166
    %v1168 = vand.u32 %v1167, 4294901760
    %1169 = vmatpush1.msra.mxu0 %v1168
    %1170 = vmatprep.subr.mxu0 0.0
    %v1171 = vand.u32 %v681, 4294901760
    %v1172 = vsub.f32 %v681, %v1171
    %v1173 = vand.u32 %v1172, 4294901760
    %1174 = vmatpush1.msra.mxu0 %v1173
    %1175 = vmatprep.subr.mxu0 0.0
    %v1176 = vand.u32 %v682, 4294901760
    %v1177 = vsub.f32 %v682, %v1176
    %v1178 = vand.u32 %v1177, 4294901760
    %1179 = vmatpush1.msra.mxu0 %v1178
    %1180 = vmatprep.subr.mxu0 0.0
    %1181 = vmatpush1.msra.mxu0 0.0
    %1182 = vmatprep.subr.mxu0 0.0
    %1183 = vmatpush1.msra.mxu0 0.0
    %1184 = vmatprep.subr.mxu0 0.0
    %1185 = vmatpush1.msra.mxu0 0.0
    %1186 = vmatprep.subr.mxu0 0.0
    %1187 = vmatpush1.msra.mxu0 0.0
    %1188 = vmatprep.subr.mxu0 0.0
    %1189 = vmatpush1.msra.mxu0 0.0
    %1190 = vmatprep.subr.mxu0 0.0
    %1191 = vmatpush1.msra.mxu0 0.0
    %1192 = vmatprep.subr.mxu0 0.0
    %1193 = vmatpush1.msra.mxu0 0.0
    %1194 = vmatprep.subr.mxu0 0.0
    %1195 = vmatpush1.msra.mxu0 0.0
    %1196 = vmatprep.subr.mxu0 0.0
    %1197 = vmatpush1.msra.mxu0 0.0
    %1198 = vmatprep.subr.mxu0 0.0
    %1199 = vmatpush1.msra.mxu0 0.0
    %1200 = vmatprep.subr.mxu0 0.0
    %1201 = vmatpush1.msra.mxu0 0.0
    %1202 = vmatprep.subr.mxu0 0.0
    %1203 = vmatpush1.msra.mxu0 0.0
    %1204 = vmatprep.subr.mxu0 0.0
    %1205 = vmatpush1.msra.mxu0 0.0
    %1206 = vmatprep.subr.mxu0 0.0
    %1207 = vmatpush1.msra.mxu0 0.0
    %1208 = vmatprep.subr.mxu0 0.0
    %1209 = vmatpush1.msra.mxu0 0.0
    %1210 = vmatprep.subr.mxu0 0.0
    %1211 = vmatpush1.msra.mxu0 0.0
    %1212 = vmatprep.subr.mxu0 0.0
    %1213 = vmatpush1.msra.mxu0 0.0
    %1214 = vmatprep.subr.mxu0 0.0
    %1215 = vmatpush1.msra.mxu0 0.0
    %1216 = vmatprep.subr.mxu0 0.0
    %1217 = vmatpush1.msra.mxu0 0.0
    %1218 = vmatprep.subr.mxu0 0.0
    %1219 = vmatpush1.msra.mxu0 0.0
    %1220 = vmatprep.mubr.f32.mxu0 0.0
    %v1221 = vand.u32 %v685, 4294901760
    %1222 = vmatmul.mubr.f32.gmra.mrb[0].mxu0 %v1221
    %v1223 = vpop.f32.mrb[0].mxu0
    %v1224 = vadd.f32 %v1109, %v1223
    %v1225 = vpop.f32.mrb[0].mxu0
    %1226 = vmatprep.mubr.f32.mxu0 0.0
    %v1227 = vand.u32 %v688, 4294901760
    %1228 = vmatmul.mubr.f32.gmra.mrb[0].mxu0 %v1227
    %v1229 = vpop.f32.mrb[0].mxu0
    %v1230 = vadd.f32 %v1117, %v1229
    %v1231 = vpop.f32.mrb[0].mxu0
    %1232 = vdwg.mxu0
    %1233 = vmatprep.subr.mxu0 0.0
    %v1234 = vand.u32 %v671, 4294901760
    %1235 = vmatpush1.msra.mxu0 %v1234
    %1236 = vmatprep.subr.mxu0 0.0
    %v1237 = vand.u32 %v672, 4294901760
    %1238 = vmatpush1.msra.mxu0 %v1237
    %1239 = vmatprep.subr.mxu0 0.0
    %v1240 = vand.u32 %v673, 4294901760
    %1241 = vmatpush1.msra.mxu0 %v1240
    %1242 = vmatprep.subr.mxu0 0.0
    %v1243 = vand.u32 %v674, 4294901760
    %1244 = vmatpush1.msra.mxu0 %v1243
    %1245 = vmatprep.subr.mxu0 0.0
    %v1246 = vand.u32 %v675, 4294901760
    %1247 = vmatpush1.msra.mxu0 %v1246
    %1248 = vmatprep.subr.mxu0 0.0
    %v1249 = vand.u32 %v676, 4294901760
    %1250 = vmatpush1.msra.mxu0 %v1249
    %1251 = vmatprep.subr.mxu0 0.0
    %v1252 = vand.u32 %v677, 4294901760
    %1253 = vmatpush1.msra.mxu0 %v1252
    %1254 = vmatprep.subr.mxu0 0.0
    %v1255 = vand.u32 %v678, 4294901760
    %1256 = vmatpush1.msra.mxu0 %v1255
    %1257 = vmatprep.subr.mxu0 0.0
    %v1258 = vand.u32 %v679, 4294901760
    %1259 = vmatpush1.msra.mxu0 %v1258
    %1260 = vmatprep.subr.mxu0 0.0
    %v1261 = vand.u32 %v680, 4294901760
    %1262 = vmatpush1.msra.mxu0 %v1261
    %1263 = vmatprep.subr.mxu0 0.0
    %v1264 = vand.u32 %v681, 4294901760
    %1265 = vmatpush1.msra.mxu0 %v1264
    %1266 = vmatprep.subr.mxu0 0.0
    %v1267 = vand.u32 %v682, 4294901760
    %1268 = vmatpush1.msra.mxu0 %v1267
    %1269 = vmatprep.subr.mxu0 0.0
    %1270 = vmatpush1.msra.mxu0 0.0
    %1271 = vmatprep.subr.mxu0 0.0
    %1272 = vmatpush1.msra.mxu0 0.0
    %1273 = vmatprep.subr.mxu0 0.0
    %1274 = vmatpush1.msra.mxu0 0.0
    %1275 = vmatprep.subr.mxu0 0.0
    %1276 = vmatpush1.msra.mxu0 0.0
    %1277 = vmatprep.subr.mxu0 0.0
    %1278 = vmatpush1.msra.mxu0 0.0
    %1279 = vmatprep.subr.mxu0 0.0
    %1280 = vmatpush1.msra.mxu0 0.0
    %1281 = vmatprep.subr.mxu0 0.0
    %1282 = vmatpush1.msra.mxu0 0.0
    %1283 = vmatprep.subr.mxu0 0.0
    %1284 = vmatpush1.msra.mxu0 0.0
    %1285 = vmatprep.subr.mxu0 0.0
    %1286 = vmatpush1.msra.mxu0 0.0
    %1287 = vmatprep.subr.mxu0 0.0
    %1288 = vmatpush1.msra.mxu0 0.0
    %1289 = vmatprep.subr.mxu0 0.0
    %1290 = vmatpush1.msra.mxu0 0.0
    %1291 = vmatprep.subr.mxu0 0.0
    %1292 = vmatpush1.msra.mxu0 0.0
    %1293 = vmatprep.subr.mxu0 0.0
    %1294 = vmatpush1.msra.mxu0 0.0
    %1295 = vmatprep.subr.mxu0 0.0
    %1296 = vmatpush1.msra.mxu0 0.0
    %1297 = vmatprep.subr.mxu0 0.0
    %1298 = vmatpush1.msra.mxu0 0.0
    %1299 = vmatprep.subr.mxu0 0.0
    %1300 = vmatpush1.msra.mxu0 0.0
    %1301 = vmatprep.subr.mxu0 0.0
    %1302 = vmatpush1.msra.mxu0 0.0
    %1303 = vmatprep.subr.mxu0 0.0
    %1304 = vmatpush1.msra.mxu0 0.0
    %1305 = vmatprep.subr.mxu0 0.0
    %1306 = vmatpush1.msra.mxu0 0.0
    %1307 = vmatprep.subr.mxu0 0.0
    %1308 = vmatpush1.msra.mxu0 0.0
    %1309 = vmatprep.mubr.f32.mxu0 0.0
    %v1310 = vand.u32 %v685, 4294901760
    %1311 = vmatmul.mubr.f32.gmra.mrb[0].mxu0 %v1310
    %v1312 = vpop.f32.mrb[0].mxu0
    %v1313 = vadd.f32 %v1224, %v1312
    %v1314 = vpop.f32.mrb[0].mxu0
    %1315 = vmatprep.mubr.f32.mxu0 0.0
    %v1316 = vand.u32 %v688, 4294901760
    %1317 = vmatmul.mubr.f32.gmra.mrb[0].mxu0 %v1316
    %v1318 = vpop.f32.mrb[0].mxu0
    %v1319 = vadd.f32 %v1230, %v1318
    %v1320 = vpop.f32.mrb[0].mxu0
    %1321 = vdwg.mxu0
    %v1322 = vmul.f32 %v662, %v1313
    %v1323 = vmul.f32 %v668, %v1319
    %1324 = vmatprep.subr.mxu0 0.0
    %1325 = vmatpush1.xpose.msra.mxu0 %v1322
    %1326 = vmatprep.subr.mxu0 0.0
    %1327 = vmatpush1.xpose.msra.mxu0 %v1323
    %1328 = vmatprep.subr.mxu0 0.0
    %1329 = vmatpush1.xpose.msra.mxu0 0.0
    %1330 = vmatprep.subr.mxu0 0.0
    %1331 = vmatpush1.xpose.msra.mxu0 0.0
    %1332 = vmatprep.subr.mxu0 0.0
    %1333 = vmatpush1.xpose.msra.mxu0 0.0
    %1334 = vmatprep.subr.mxu0 0.0
    %1335 = vmatpush1.xpose.msra.mxu0 0.0
    %1336 = vmatprep.subr.mxu0 0.0
    %1337 = vmatpush1.xpose.msra.mxu0 0.0
    %1338 = vmatprep.subr.mxu0 0.0
    %1339 = vmatpush1.xpose.msra.mxu0 0.0
    %1340 = vmatprep.subr.mxu0 0.0
    %1341 = vmatpush1.xpose.msra.mxu0 0.0
    %1342 = vmatprep.subr.mxu0 0.0
    %1343 = vmatpush1.xpose.msra.mxu0 0.0
    %1344 = vmatprep.subr.mxu0 0.0
    %1345 = vmatpush1.xpose.msra.mxu0 0.0
    %1346 = vmatprep.subr.mxu0 0.0
    %1347 = vmatpush1.xpose.msra.mxu0 0.0
    %1348 = vmatprep.subr.mxu0 0.0
    %1349 = vmatpush1.xpose.msra.mxu0 0.0
    %1350 = vmatprep.subr.mxu0 0.0
    %1351 = vmatpush1.xpose.msra.mxu0 0.0
    %1352 = vmatprep.subr.mxu0 0.0
    %1353 = vmatpush1.xpose.msra.mxu0 0.0
    %1354 = vmatprep.subr.mxu0 0.0
    %1355 = vmatpush1.xpose.msra.mxu0 0.0
    %1356 = vmatprep.subr.mxu0 0.0
    %1357 = vmatpush1.xpose.msra.mxu0 0.0
    %1358 = vmatprep.subr.mxu0 0.0
    %1359 = vmatpush1.xpose.msra.mxu0 0.0
    %1360 = vmatprep.subr.mxu0 0.0
    %1361 = vmatpush1.xpose.msra.mxu0 0.0
    %1362 = vmatprep.subr.mxu0 0.0
    %1363 = vmatpush1.xpose.msra.mxu0 0.0
    %1364 = vmatprep.subr.mxu0 0.0
    %1365 = vmatpush1.xpose.msra.mxu0 0.0
    %1366 = vmatprep.subr.mxu0 0.0
    %1367 = vmatpush1.xpose.msra.mxu0 0.0
    %1368 = vmatprep.subr.mxu0 0.0
    %1369 = vmatpush1.xpose.msra.mxu0 0.0
    %1370 = vmatprep.subr.mxu0 0.0
    %1371 = vmatpush1.xpose.msra.mxu0 0.0
    %1372 = vmatprep.subr.mxu0 0.0
    %1373 = vmatpush1.xpose.msra.mxu0 0.0
    %1374 = vmatprep.subr.mxu0 0.0
    %1375 = vmatpush1.xpose.msra.mxu0 0.0
    %1376 = vmatprep.subr.mxu0 0.0
    %1377 = vmatpush1.xpose.msra.mxu0 0.0
    %1378 = vmatprep.subr.mxu0 0.0
    %1379 = vmatpush1.xpose.msra.mxu0 0.0
    %1380 = vmatprep.subr.mxu0 0.0
    %1381 = vmatpush1.xpose.msra.mxu0 0.0
    %1382 = vmatprep.subr.mxu0 0.0
    %1383 = vmatpush1.xpose.msra.mxu0 0.0
    %1384 = vmatprep.subr.mxu0 0.0
    %1385 = vmatpush1.xpose.msra.mxu0 0.0
    %1386 = vmatprep.subr.mxu0 0.0
    %1387 = vmatpush1.xpose.msra.mxu0 0.0
    %1388 = vmatprep.mubr.f32.mxu0 0.0
    %1389 = vmatmul.mubr.f32.gmra.mrb[0].mxu0 1.0
    %v1390 = vpop.f32.mrb[0].mxu0
    %v1391 = vadd.f32 0.0, %v1390
    %v1392 = vpop.f32.mrb[0].mxu0
    %1393 = vdwg.mxu0
    %v1394 = vxor.u32 %v1391, 2147483648
    %v1395 = vmul.f32 %v1394, 1.442695
    %v1396 = vpow.pop %v1395
    %v1397 = vadd.f32 %v1396, 1.0
    %v1398 = vrcp.pop %v1397
    %v1399 = vmul.f32 1.0, %v1398
    %vm1400 = vcmask 122880
    %1401 = vst.msk [vmem:[#allocation7] sm:$0x1] %vm1400, %v1399
    // Predicated region
    $region26: #{tpu_custom_call.1} parent=1 // pred_check
      _
    $region27: #{tpu_custom_call.1} parent=1 // pred_check_branch
      %1403 = sbr.rel (0) target = $region29
    $region28: #{tpu_custom_call.1} parent=1 // pred_region
      %s1405 = ssub.s32 16, 16
      %1406 = vsyncadd [#allocation4], %s1405
      %s1408 = sshll.u32 [#allocation7], 4
      %s1409 = int_to_ptr.vmem [resolvable:$true] %s1408
      %1411 = dma.vmem_to_hbm [thread:$0]  %s1409, 16, %s4, [#allocation4]
    $region29: #{tpu_custom_call.1} parent=1 // pred_fallthru
      _
    // Predicated region
    $region30: #{tpu_custom_call.1} parent=1 // pred_check
      _
    $region31: #{tpu_custom_call.1} parent=1 // pred_check_branch
      %1413 = sbr.rel (0) target = $region33
    $region32: #{tpu_custom_call.1} parent=1 // pred_region
      %1414 = dma.done [#allocation4], 16
    $region33: #{tpu_custom_call.1} parent=1 // pred_fallthru
      _
    %1415 = vsyncpa [#allocation3], 1
    %1416 = vsyncpa [#allocation6], 1
    %1417 = vsyncpa [#allocation4], 1

</llo_original>
